<compile_context>
chip_gen: v5e
topology: v5e:2x2
jax: 0.10.0
libtpu: 0.0.40
codegen_flags: <defaults>
</compile_context>

<pallas_src>
import math

import jax
import jax.numpy as jnp
from jax.experimental import pallas as pl
from jax.experimental.pallas import tpu as pltpu


def _round_up(x, m):
    return ((x + m - 1) // m) * m


# Tables up to this size stay fully resident in VMEM on every current
# generation (v7x: 64 MiB physical / 32 MiB default scoped VMEM; v5e/v6e:
# 128 MiB physical, scoped limit can be raised).  Above it we fall back to the
# per-row HBM gather.
_RESIDENT_TABLE_BYTES = 16 * 1024 * 1024


# ----------------------------- Pallas kernels ------------------------------ #

def _linear_kernel(x_ref, w_ref, b_ref, o_ref):
    # y = x @ W^T + b.  Cast activations to the bf16 weight dtype inside the
    # kernel (no extra XLA pass in the wrapper); f32 MXU accumulation, f32 bias
    # add, single cast at the lane-dense store.
    x = x_ref[...].astype(w_ref.dtype)
    y = jnp.dot(x, w_ref[...], preferred_element_type=jnp.float32)
    o_ref[...] = (y + b_ref[...]).astype(o_ref.dtype)


def _onehot_gather_kernel(ids_ref, tbl_ref, o_ref):
    # Batched embedding lookup with the whole (N, Dp) table resident in VMEM.
    # one_hot(ids) @ table runs on the MXU and reproduces rows exactly.
    # Out-of-range ids give an all-zero row (no OOB memory access possible).
    ids = ids_ref[...]                                    # (G, 1) int32
    g = ids.shape[0]
    n = tbl_ref.shape[0]
    iota = jax.lax.broadcasted_iota(jnp.int32, (g, n), 1)
    one_hot = (iota == ids).astype(tbl_ref.dtype)         # (G, N)
    o_ref[...] = jnp.dot(one_hot, tbl_ref[...],
                         preferred_element_type=jnp.float32).astype(o_ref.dtype)


def _gather_row_kernel(ids_ref, row_ref, o_ref):
    # Fallback (table too big for VMEM): the row was already selected by the
    # data-dependent index_map, so the body is a pure VMEM copy.
    del ids_ref
    o_ref[...] = row_ref[...]


# ------------------------------ wrappers ----------------------------------- #

def linear_projection(x, w_t_pad, b_pad, out_dim):
    """x: (B, 256) f32, w_t_pad: (256, Dp) bf16, b_pad: (1, Dp) f32 -> (B, out_dim)."""
    B, K = x.shape
    Dp = w_t_pad.shape[1]
    Bp8 = _round_up(B, 8)
    if Bp8 > 512:
        # Big tiles amortize the ~0.35 us per-grid-step overhead; keep >= 2
        # "parallel" steps so both v7x TensorCores get work (no-op on v5e/v6e).
        TB = min(512, _round_up((Bp8 + 1) // 2, 8))
    else:
        TB = Bp8   # single step; ragged tail handled by Pallas block masking

    out = pl.pallas_call(
        _linear_kernel,
        out_shape=jax.ShapeDtypeStruct((B, Dp), jnp.float32),
        grid_spec=pltpu.PrefetchScalarGridSpec(
            num_scalar_prefetch=0,
            grid=(pl.cdiv(B, TB),),
            in_specs=[
                pl.BlockSpec((TB, K), lambda i: (i, 0)),   # activations stream
                pl.BlockSpec((K, Dp), lambda i: (0, 0)),   # bf16 weight, grid-invariant
                pl.BlockSpec((1, Dp), lambda i: (0, 0)),   # f32 bias, grid-invariant
            ],
            out_specs=pl.BlockSpec((TB, Dp), lambda i: (i, 0)),
        ),
        compiler_params=pltpu.CompilerParams(
            dimension_semantics=("parallel",)),
    )(x, w_t_pad, b_pad)
    # Lane-dense Dp stores in the kernel; only the cheap column slice remains
    # (drop it entirely if downstream consumers accept Dp-padded features).
    return out[:, :out_dim]


def embedding_lookup_resident(ids, table_pad, out_dim):
    """ids: (B,) int, table_pad: (N, Dp) f32 (VMEM-resident) -> (B, out_dim)."""
    B = ids.shape[0]
    N, Dp = table_pad.shape
    ids2 = ids.astype(jnp.int32).reshape(B, 1)
    # >= 8 ids per step for sublane-dense unmasked stores, but cap G so the
    # (G, N) one-hot intermediate stays ~2 MiB even for large N.
    G = min(256, _round_up(B, 8))
    max_g = max(8, ((2 * 1024 * 1024) // (N * 4)) // 8 * 8)
    G = min(G, max_g)
    # TODO(synk): for very large resident tables an in-kernel jnp.take gather
    # would beat the one-hot matmul; not needed at these sizes.
    out = pl.pallas_call(
        _onehot_gather_kernel,
        out_shape=jax.ShapeDtypeStruct((B, Dp), table_pad.dtype),
        grid_spec=pltpu.PrefetchScalarGridSpec(
            num_scalar_prefetch=0,
            grid=(pl.cdiv(B, G),),
            in_specs=[
                pl.BlockSpec((G, 1), lambda i: (i, 0)),    # ids stream
                pl.BlockSpec((N, Dp), lambda i: (0, 0)),   # whole table, grid-invariant
            ],
            out_specs=pl.BlockSpec((G, Dp), lambda i: (i, 0)),
        ),
        compiler_params=pltpu.CompilerParams(
            dimension_semantics=("parallel",),
            vmem_limit_bytes=32 << 20),
    )(ids2, table_pad)
    return out[:, :out_dim]


def embedding_lookup_rowgather(ids, table3_pad, out_dim):
    """Fallback per-row HBM gather for tables too large to keep in VMEM."""
    B = ids.shape[0]
    N, _, Dp = table3_pad.shape
    ids = ids.astype(jnp.int32)

    def row_map(i, ids_ref):
        # Clamp with scalar SMEM ops inside the index_map (no extra XLA pass).
        # TODO(synk): torch.nn.Embedding raises on out-of-range ids; we clamp.
        r = jnp.minimum(jnp.maximum(ids_ref[i], 0), N - 1)
        return (r, 0, 0)

    out = pl.pallas_call(
        _gather_row_kernel,
        out_shape=jax.ShapeDtypeStruct((B, 1, Dp), table3_pad.dtype),
        grid_spec=pltpu.PrefetchScalarGridSpec(
            num_scalar_prefetch=1,                 # ids -> SMEM, feed index_maps
            grid=(B,),
            in_specs=[
                # Tiny, pure-latency row DMAs: keep several fetches in flight.
                pl.BlockSpec((1, 1, Dp), row_map, pipeline_mode=pl.Buffered(4)),
            ],
            out_specs=pl.BlockSpec((1, 1, Dp), lambda i, ids_ref: (i, 0, 0)),
        ),
        compiler_params=pltpu.CompilerParams(
            dimension_semantics=("arbitrary",)),
    )(ids, table3_pad)
    return out.reshape(B, Dp)[:, :out_dim]


# --------------------------- SpeakerEncoder -------------------------------- #

class SpeakerEncoder:
    """Speaker embedding encoder (Pallas-backed forward)."""

    def __init__(self, speaker_embedding_dim, num_speakers=None, *, key):
        self.speaker_embedding_dim = speaker_embedding_dim
        self.num_speakers = num_speakers
        D = speaker_embedding_dim
        Dp = _round_up(D, 128)               # lane-dense feature width
        self._Dp = Dp
        if num_speakers:
            # nn.Embedding default init: N(0, 1).  Kept f32: the one-hot matmul
            # gather reproduces rows exactly.
            self.embedding_weight = jax.random.normal(
                key, (num_speakers, D), dtype=jnp.float32)
            table_pad = jnp.pad(self.embedding_weight, ((0, 0), (0, Dp - D)))
            self._resident = (num_speakers * Dp * 4) <= _RESIDENT_TABLE_BYTES
            if self._resident:
                self._table_pad = table_pad                       # (N, Dp)
            else:
                # (N, 1, Dp) view keeps the gathered dim out of the last-two
                # block dims for the per-row fallback gather.
                self._table3_pad = table_pad.reshape(num_speakers, 1, Dp)
        else:
            # nn.Linear(256, D) default init: U(-1/sqrt(256), 1/sqrt(256)).
            k_w, k_b = jax.random.split(key)
            bound = 1.0 / math.sqrt(256.0)
            self.proj_w = jax.random.uniform(
                k_w, (D, 256), jnp.float32, -bound, bound)
            self.proj_b = jax.random.uniform(
                k_b, (D,), jnp.float32, -bound, bound)
            # Transpose + lane-pad ONCE at init; weight stored in bf16 (half
            # the DMA bytes, native MXU datapath), bias kept in f32.
            self._w_t_pad = jnp.pad(
                self.proj_w.T, ((0, 0), (0, Dp - D))).astype(jnp.bfloat16)
            self._b_pad = jnp.pad(self.proj_b, (0, Dp - D)).reshape(1, Dp)

    def __call__(self, speaker_ids=None, speaker_embeddings=None):
        if speaker_ids is not None and self.num_speakers:
            if self._resident:
                return embedding_lookup_resident(
                    speaker_ids, self._table_pad, self.speaker_embedding_dim)
            return embedding_lookup_rowgather(
                speaker_ids, self._table3_pad, self.speaker_embedding_dim)
        elif speaker_embeddings is not None:
            return linear_projection(
                speaker_embeddings, self._w_t_pad, self._b_pad,
                self.speaker_embedding_dim)
        else:
            raise ValueError(
                "Either speaker_ids or speaker_embeddings must be provided")


# --------------------------------- main ------------------------------------ #

if __name__ == "__main__":
    key = jax.random.PRNGKey(0)
    k_emb, k_proj, k_ids, k_x, k_ids2, k_x2 = jax.random.split(key, 6)

    B = 2                 # batch
    D = 32                # speaker_embedding_dim
    N_SPK = 8             # num_speakers (embedding path)
    IN_DIM = 256          # projection input dim (fixed by the module)

    # --- path 1: learned embedding table, indexed by speaker_ids ---
    enc_emb = SpeakerEncoder(D, num_speakers=N_SPK, key=k_emb)
    speaker_ids = jax.random.randint(k_ids, (B,), 0, N_SPK, dtype=jnp.int32)
    out_emb = jax.block_until_ready(enc_emb(speaker_ids=speaker_ids))
    ref_emb = enc_emb.embedding_weight[speaker_ids]
    assert out_emb.shape == (B, D)
    assert jnp.allclose(out_emb, ref_emb, atol=1e-6, rtol=1e-6)

    # ragged batch (not a multiple of 8): masked tail store, no wrapper pad
    ids_ragged = jax.random.randint(k_ids2, (11,), 0, N_SPK, dtype=jnp.int32)
    out_emb_r = jax.block_until_ready(enc_emb(speaker_ids=ids_ragged))
    assert out_emb_r.shape == (11, D)
    assert jnp.allclose(out_emb_r, enc_emb.embedding_weight[ids_ragged],
                        atol=1e-6, rtol=1e-6)

    # --- path 2: projection of external 256-d speaker embeddings ---
    enc_proj = SpeakerEncoder(D, num_speakers=None, key=k_proj)
    speaker_embeddings = jax.random.normal(k_x, (B, IN_DIM), dtype=jnp.float32)
    out_proj = jax.block_until_ready(
        enc_proj(speaker_embeddings=speaker_embeddings))
    ref_proj = speaker_embeddings @ enc_proj.proj_w.T + enc_proj.proj_b
    assert out_proj.shape == (B, D)
    # bf16 weights + f32 accumulation: loosened tolerance vs the f32 reference.
    assert jnp.allclose(out_proj, ref_proj, atol=2e-2, rtol=2e-2)

    # ragged batch for the projection path as well
    x_ragged = jax.random.normal(k_x2, (10, IN_DIM), dtype=jnp.float32)
    out_proj_r = jax.block_until_ready(enc_proj(speaker_embeddings=x_ragged))
    ref_proj_r = x_ragged @ enc_proj.proj_w.T + enc_proj.proj_b
    assert out_proj_r.shape == (10, D)
    assert jnp.allclose(out_proj_r, ref_proj_r, atol=2e-2, rtol=2e-2)

    print("KERNEL_OK")
</pallas_src>

<mosaic_0001>
module attributes {stable_mosaic.version = 11 : i64} {
  func.func @_onehot_gather_kernel(%arg0: i32, %arg1: memref<8x1xi32, #tpu.memory_space<vmem>>, %arg2: memref<8x128xf32, #tpu.memory_space<vmem>>, %arg3: memref<8x128xf32, #tpu.memory_space<vmem>>) attributes {dimension_semantics = [#tpu.dimension_semantics<parallel>], iteration_bounds = array<i64: 1>, scalar_prefetch = 0 : i64, scratch_operands = 0 : i64, tpu.core_type = #tpu.core_type<tc>, window_params = [{transform_indices = @transform_0, window_bounds = array<i64: 8, 1>}, {pipeline_mode = #tpu.pipeline_mode<synchronous>, transform_indices = @transform_1, window_bounds = array<i64: 8, 128>}, {transform_indices = @transform_2, window_bounds = array<i64: 8, 128>}]} {
    %c0 = arith.constant 0 : index
    %c0_0 = arith.constant 0 : index
    %0 = vector.load %arg1[%c0, %c0_0] : memref<8x1xi32, #tpu.memory_space<vmem>>, vector<8x1xi32>
    %1 = tpu.iota {dimensions = array<i32: 1>} : vector<8x8xi32>
    %2 = vector.broadcast %0 : vector<8x1xi32> to vector<8x8xi32>
    %3 = arith.cmpi eq, %1, %2 : vector<8x8xi32>
    %4 = arith.extui %3 : vector<8x8xi1> to vector<8x8xi32>
    %5 = arith.sitofp %4 : vector<8x8xi32> to vector<8x8xf32>
    %c0_1 = arith.constant 0 : index
    %c0_2 = arith.constant 0 : index
    %6 = vector.load %arg2[%c0_1, %c0_2] : memref<8x128xf32, #tpu.memory_space<vmem>>, vector<8x128xf32>
    %cst = arith.constant dense<0.000000e+00> : vector<8x128xf32>
    %7 = tpu.matmul %5, %6, %cst {dimension_numbers = #tpu.dot_dimension_numbers<[1], [0], [0], [1], [0, 0, 1, 1], [], []>} : vector<8x8xf32>, vector<8x128xf32>, vector<8x128xf32> -> vector<8x128xf32>
    %c0_3 = arith.constant 0 : index
    %c0_4 = arith.constant 0 : index
    %8 = vector.load %arg3[%c0_3, %c0_4] : memref<8x128xf32, #tpu.memory_space<vmem>>, vector<8x128xf32>
    tpu.vector_store %arg3[%c0_3, %c0_4], %7 {strides = array<i32>} : memref<8x128xf32, #tpu.memory_space<vmem>>, vector<8x128xf32>,
    return
  }
  func.func @transform_0(%arg0: i32) -> (i32, i32) {
    %c0_i32 = arith.constant 0 : i32
    %c0_i32_0 = arith.constant 0 : i32
    return %arg0, %c0_i32 : i32, i32
  }
  func.func @transform_1(%arg0: i32) -> (i32, i32) {
    %c0_i32 = arith.constant 0 : i32
    %c0_i32_0 = arith.constant 0 : i32
    %c0_i32_1 = arith.constant 0 : i32
    return %c0_i32, %c0_i32_0 : i32, i32
  }
  func.func @transform_2(%arg0: i32) -> (i32, i32) {
    %c0_i32 = arith.constant 0 : i32
    %c0_i32_0 = arith.constant 0 : i32
    return %arg0, %c0_i32 : i32, i32
  }
}

</mosaic_0001>

<llo_original>
// kernel: tpu_custom_call.1
$region0: #{tpu_custom_call.1}
  #allocation0 [shape = 'u32[]', space=smem, size = 0x4, offset = 0x4, fixed_abs, tag = 'smem constant byte address 0x4 - core index']
  #allocation1 [shape = 'u32[72,128]{1,0:T(1,128)}', space=vmem, size = 0x9000, scoped, tag = 'internal scratch']
  %s0 = inlined_call_operand.vmem [shape: s32[2,1], index: 0, kind: input, shape index: {}]
  %s1 = inlined_call_operand.hbm [shape: f32[8,128], index: 1, kind: input, shape index: {}]
  %s2 = inlined_call_operand.hbm [shape: f32[2,128], index: 2, kind: output, shape index: {}]
  %s3 = sld [smem:[#allocation0]]
  $region22: #{tpu_custom_call.1} parent=0
    _
  %s5 = ssub.s32 1, %s3
  %s6 = scalar_select 0, %s5, %s3
  $region1: #{tpu_custom_call.1} parent=0
    #allocation2 [shape = 'u8[4096]{0}', space=vmem, size = 0x1000, scoped, tag = 'input window, operand 1, single buffered']
    #allocation3 [shape = 's32[1]{0}', space=sflag, size = 0x4, scoped, tag = 'scoped memory for tpu_custom_call.1']
    #allocation4 [shape = 's32[1]{0}', space=sflag, size = 0x4, scoped, tag = 'scoped memory for tpu_custom_call.1']
    #allocation5 [shape = 'u8[4096]{0}', space=vmem, size = 0x1000, scoped, tag = 'output window, operand 0, single buffered']
    %7 = vsyncpa [#allocation3], 0
    %8 = vsyncpa [#allocation4], 0
    // Predicated region
    $region2: #{tpu_custom_call.1} parent=1 // pred_check
      _
    $region3: #{tpu_custom_call.1} parent=1 // pred_check_branch
      %10 = sbr.rel (0) target = $region5
    $region4: #{tpu_custom_call.1} parent=1 // pred_region
      _
    $region5: #{tpu_custom_call.1} parent=1 // pred_fallthru
      _
    // Predicated region
    $region6: #{tpu_custom_call.1} parent=1 // pred_check
      _
    $region7: #{tpu_custom_call.1} parent=1 // pred_check_branch
      %12 = sbr.rel (0) target = $region9
    $region8: #{tpu_custom_call.1} parent=1 // pred_region
      %14 = vsyncadd [#allocation3], 0
      %s16 = sshll.u32 %s1, 4
      %s17 = int_to_ptr.hbm [resolvable:$true] %s16
      %s18 = sshll.u32 [#allocation2], 4
      %s19 = int_to_ptr.vmem [resolvable:$true] %s18
      %21 = dma.hbm_to_vmem [thread:$0]  %s17, 128, %s19, [#allocation3]
    $region9: #{tpu_custom_call.1} parent=1 // pred_fallthru
      _
    // Predicated region
    $region10: #{tpu_custom_call.1} parent=1 // pred_check
      _
    $region11: #{tpu_custom_call.1} parent=1 // pred_check_branch
      %23 = sbr.rel (0) target = $region13
    $region12: #{tpu_custom_call.1} parent=1 // pred_region
      %25 = dma.done [#allocation3], 128
    $region13: #{tpu_custom_call.1} parent=1 // pred_fallthru
      _
    %v26 = vld [vmem:[%s0] sm:$0xff]
    %v27 = vlaneseq
    %v28 = vand.u32 %v27, 127
    %29 = vset.pattern.permute.xlu0 0
    %30 = vperm.xlu0 %29, %v26
    %v31 = vpop.permute.xlu0 %30
    %vm32 = vcmp.eq.s32.totalorder %v28, %v31
    %v33 = vsel %vm32, 1, 0
    %v34 = vcvt.s32.f32 %v33
    %v35 = vld [vmem:[#allocation2] sm:$0xff]
    %vm36 = vcmask 64512
    %v38 = vsel %vm36, %v34, 0
    %40 = vmatpush.msra.mxu0 0.0
    %41 = vmatpush.msra.mxu0 0.0
    %42 = vmatpush.msra.mxu0 0.0
    %43 = vmatpush.msra.mxu0 0.0
    %44 = vmatpush.msra.mxu0 0.0
    %45 = vmatpush.msra.mxu0 0.0
    %46 = vmatpush.msra.mxu0 0.0
    %47 = vmatpush.msra.mxu0 0.0
    %48 = vmatpush.msra.mxu0 0.0
    %49 = vmatpush.msra.mxu0 0.0
    %50 = vmatpush.msra.mxu0 0.0
    %51 = vmatpush.msra.mxu0 0.0
    %52 = vmatpush.msra.mxu0 0.0
    %53 = vmatpush.msra.mxu0 0.0
    %54 = vmatpush.msra.mxu0 0.0
    %55 = vmatpush.msra.mxu0 %v35
    %56 = vmatmul.f32.gmra.mxu0 %v38
    %v57 = vpop.f32.mrf.mxu0
    %v58 = vadd.f32 0.0, %v57
    %59 = vdwg.mxu0
    %60 = vst [vmem:[#allocation5] sm:$0xff] %v58
    // Predicated region
    $region14: #{tpu_custom_call.1} parent=1 // pred_check
      _
    $region15: #{tpu_custom_call.1} parent=1 // pred_check_branch
      %62 = sbr.rel (0) target = $region17
    $region16: #{tpu_custom_call.1} parent=1 // pred_region
      %64 = vsyncadd [#allocation4], 96
      %s65 = sshll.u32 [#allocation5], 4
      %s66 = int_to_ptr.vmem [resolvable:$true] %s65
      %s67 = sshll.u32 %s2, 4
      %s68 = int_to_ptr.hbm [resolvable:$true] %s67
      %73 = dma.vmem_to_hbm [thread:$0]  %s66, 32, %s68, [#allocation4], 32, 32, 2
    $region17: #{tpu_custom_call.1} parent=1 // pred_fallthru
      _
    // Predicated region
    $region18: #{tpu_custom_call.1} parent=1 // pred_check
      _
    $region19: #{tpu_custom_call.1} parent=1 // pred_check_branch
      %75 = sbr.rel (0) target = $region21
    $region20: #{tpu_custom_call.1} parent=1 // pred_region
      %77 = dma.done [#allocation4], 128
    $region21: #{tpu_custom_call.1} parent=1 // pred_fallthru
      _
    %78 = vsyncpa [#allocation3], 1
    %79 = vsyncpa [#allocation4], 1

</llo_original>
